<compile_context>
chip_gen: v7x
topology: tpu7x:2x2x1
jax: 0.10.0
libtpu: 0.0.40
codegen_flags: <defaults>
</compile_context>

<pallas_src>
import jax
import jax.numpy as jnp
from jax.experimental import pallas as pl
from jax.experimental.pallas import tpu as pltpu

_LANES = 128
_MIB = 1024 * 1024


def _drop_path_kernel(x_ref, scale_ref, o_ref):
    # x_ref / o_ref: (TB, TF) lane-dense tile of the flattened input.
    # scale_ref:     (TB, 1) f32 per-sample keep mask, pre-divided by keep_prob.
    # Multiply in f32, downcast once (accuracy for bf16; VPU is not the
    # bottleneck in this memory-bound kernel).
    x = x_ref[...].astype(jnp.float32)
    o_ref[...] = (x * scale_ref[...]).astype(o_ref.dtype)


def _block_target_bytes():
    # Per-buffer block-size target by TPU generation: faster HBM makes the
    # fixed ~0.35 us/grid-step overhead relatively larger, so v7x gets bigger
    # blocks; unknown devices fall back to the conservative v5e size.
    try:
        kind = jax.devices()[0].device_kind.lower()
    except Exception:
        kind = ""
    if "v7" in kind:
        return 8 * _MIB
    if "v6" in kind:
        return 4 * _MIB
    return 2 * _MIB


def _choose_tiles(B, Fp, itemsize, target_bytes):
    """Pick (TB, TF) with TB*TF*itemsize ~= target_bytes, tile-aligned."""
    tb_min = B if B < 8 else 8
    # Feature tile: as wide as possible (lane-dense, unmasked stores).
    tf = min(Fp, max(_LANES,
                     (target_bytes // (tb_min * itemsize)) // _LANES * _LANES))
    # Batch tile: fill the remaining budget with whole samples.
    tb = max(1, target_bytes // (tf * itemsize))
    tb = min(tb, 2048)  # bound the (TB, 1) scale tile's VMEM footprint
    if tb >= B:
        tb = B          # full batch dim: allowed even if not a multiple of 8
    else:
        tb = max(8, (tb // 8) * 8)
    return tb, tf


def drop_path(x, drop_prob: float = 0.0, training: bool = False, *, key=None,
              donate_x: bool = False):
    """Pallas implementation of timm/torch-style drop_path.

    Per-sample Bernoulli(keep_prob) mask broadcast over all non-batch dims:
    output = x / keep_prob * mask.  Identity when drop_prob == 0 or not
    training.
    """
    if drop_prob == 0.0 or not training:
        return x
    if key is None:
        raise ValueError("PRNG key required in training mode")

    keep_prob = 1.0 - drop_prob
    orig_shape = x.shape
    B = x.shape[0]

    # Per-sample keep mask, pre-scaled by 1/keep_prob (f32, shape (B, 1)).
    mask = jax.random.bernoulli(key, p=keep_prob, shape=(B,)).astype(jnp.float32)
    scale = (mask / jnp.float32(keep_prob)).reshape(B, 1)

    # Lane-dense 2-D view.  Pad only when F is not already a multiple of 128,
    # and only up to the next multiple of 128.
    xf = x.reshape(B, -1)
    F = xf.shape[1]
    Fp = pl.cdiv(F, _LANES) * _LANES
    padded = Fp != F
    if padded:
        xf = jnp.pad(xf, ((0, 0), (0, Fp - F)))

    itemsize = jnp.dtype(x.dtype).itemsize
    TB, TF = _choose_tiles(B, Fp, itemsize, _block_target_bytes())
    gb = pl.cdiv(B, TB)
    gf = pl.cdiv(Fp, TF)

    # Put the larger grid axis first so the parallel (megacore) split stays
    # balanced on multi-TensorCore chips even when B is tiny or odd.
    if gb >= gf:
        grid = (gb, gf)
        x_map = lambda b, f: (b, f)
        s_map = lambda b, f: (b, 0)
    else:
        grid = (gf, gb)
        x_map = lambda f, b: (b, f)
        s_map = lambda f, b: (b, 0)

    blk_bytes = TB * TF * itemsize
    scale_tile_bytes = TB * _LANES * 4          # (TB, 1) f32 pads lanes to 128
    vmem_limit = min(4 * blk_bytes + 2 * scale_tile_bytes + 4 * _MIB, 48 * _MIB)

    out = pl.pallas_call(
        _drop_path_kernel,
        out_shape=jax.ShapeDtypeStruct((B, Fp), x.dtype),
        grid=grid,
        in_specs=[
            pl.BlockSpec((TB, TF), x_map),
            pl.BlockSpec((TB, 1), s_map),
        ],
        out_specs=pl.BlockSpec((TB, TF), x_map),
        input_output_aliases=({0: 0} if (donate_x and not padded) else {}),
        compiler_params=pltpu.CompilerParams(
            dimension_semantics=("parallel", "parallel"),
            vmem_limit_bytes=vmem_limit,
        ),
    )(xf, scale)

    if padded:
        out = out[:, :F]
    return out.reshape(orig_shape)


class DropPath:
    """Drop paths (Stochastic Depth) per sample — Pallas version."""

    def __init__(self, drop_prob=None):
        self.drop_prob = drop_prob if drop_prob is not None else 0.0
        self.training = True

    def __call__(self, x, key=None):
        return drop_path(x, self.drop_prob, self.training, key=key)


if __name__ == "__main__":
    key = jax.random.PRNGKey(0)
    kx, kmask, kx2, kmask2, kx3, kmask3 = jax.random.split(key, 6)

    # --- primary case: (2, 4, 16, 16) f32, F = 1024 (lane-aligned, no pad) ---
    B, C, H, W = 2, 4, 16, 16
    x = jax.random.normal(kx, (B, C, H, W), dtype=jnp.float32)
    drop_prob = 0.25
    module = DropPath(drop_prob)
    module.training = True
    out = jax.block_until_ready(module(x, key=kmask))

    keep_prob = 1.0 - drop_prob
    m = jax.random.bernoulli(kmask, p=keep_prob, shape=(B,)).astype(jnp.float32)
    ref = x * (m / keep_prob)[:, None, None, None]
    assert jnp.allclose(out, ref, atol=1e-6), "f32 mismatch vs reference"

    # --- eval mode / drop_prob=0 must be identity ---
    module.training = False
    out_eval = jax.block_until_ready(module(x, key=kmask))
    assert jnp.array_equal(out_eval, x)
    module.training = True

    # --- ragged case: F = 35 (pads to 128, output sliced back) ---
    x2 = jax.random.normal(kx2, (3, 5, 7), dtype=jnp.float32)
    out2 = jax.block_until_ready(drop_path(x2, 0.5, True, key=kmask2))
    m2 = jax.random.bernoulli(kmask2, p=0.5, shape=(3,)).astype(jnp.float32)
    ref2 = x2 * (m2 / 0.5)[:, None, None]
    assert jnp.allclose(out2, ref2, atol=1e-6), "ragged-F mismatch vs reference"

    # --- bf16 case: f32 multiply then single downcast ---
    x3 = jax.random.normal(kx3, (4, 8, 96), dtype=jnp.bfloat16)
    out3 = jax.block_until_ready(drop_path(x3, 0.2, True, key=kmask3))
    m3 = jax.random.bernoulli(kmask3, p=0.8, shape=(4,)).astype(jnp.float32)
    ref3 = (x3.astype(jnp.float32) * (m3 / 0.8)[:, None, None]).astype(jnp.bfloat16)
    assert jnp.allclose(out3.astype(jnp.float32), ref3.astype(jnp.float32),
                        atol=1e-2), "bf16 mismatch vs reference"

    print("KERNEL_OK")
</pallas_src>

<mosaic_0001>
module attributes {stable_mosaic.version = 11 : i64} {
  func.func @_drop_path_kernel(%arg0: i32, %arg1: i32, %arg2: memref<2x1024xf32, #tpu.memory_space<vmem>>, %arg3: memref<2x1xf32, #tpu.memory_space<vmem>>, %arg4: memref<2x1024xf32, #tpu.memory_space<vmem>>) attributes {dimension_semantics = [#tpu.dimension_semantics<parallel>, #tpu.dimension_semantics<parallel>], iteration_bounds = array<i64: 1, 1>, scalar_prefetch = 0 : i64, scratch_operands = 0 : i64, tpu.core_type = #tpu.core_type<tc>, window_params = [{transform_indices = @transform_0, window_bounds = array<i64: 2, 1024>}, {transform_indices = @transform_1, window_bounds = array<i64: 2, 1>}, {transform_indices = @transform_2, window_bounds = array<i64: 2, 1024>}]} {
    %c0 = arith.constant 0 : index
    %c0_0 = arith.constant 0 : index
    %0 = vector.load %arg2[%c0, %c0_0] : memref<2x1024xf32, #tpu.memory_space<vmem>>, vector<2x1024xf32>
    %c0_1 = arith.constant 0 : index
    %c0_2 = arith.constant 0 : index
    %1 = vector.load %arg3[%c0_1, %c0_2] : memref<2x1xf32, #tpu.memory_space<vmem>>, vector<2x1xf32>
    %2 = vector.broadcast %1 : vector<2x1xf32> to vector<2x1024xf32>
    %3 = arith.mulf %0, %2 : vector<2x1024xf32>
    %c0_3 = arith.constant 0 : index
    %c0_4 = arith.constant 0 : index
    %4 = vector.load %arg4[%c0_3, %c0_4] : memref<2x1024xf32, #tpu.memory_space<vmem>>, vector<2x1024xf32>
    tpu.vector_store %arg4[%c0_3, %c0_4], %3 {strides = array<i32>} : memref<2x1024xf32, #tpu.memory_space<vmem>>, vector<2x1024xf32>,
    return
  }
  func.func @transform_0(%arg0: i32, %arg1: i32) -> (i32, i32) {
    %c0_i32 = arith.constant 0 : i32
    return %arg0, %arg1 : i32, i32
  }
  func.func @transform_1(%arg0: i32, %arg1: i32) -> (i32, i32) {
    %c0_i32 = arith.constant 0 : i32
    %c0_i32_0 = arith.constant 0 : i32
    return %arg0, %c0_i32 : i32, i32
  }
  func.func @transform_2(%arg0: i32, %arg1: i32) -> (i32, i32) {
    %c0_i32 = arith.constant 0 : i32
    return %arg0, %arg1 : i32, i32
  }
}

</mosaic_0001>

<llo_original>
// kernel: tpu_custom_call.1
$region0: #{tpu_custom_call.1}
  #allocation0 [shape = 'u32[]', space=smem, size = 0x4, offset = 0x4, fixed_abs, tag = 'smem constant byte address 0x4 - core index']
  #allocation1 [shape = 'u32[144,128]{1,0:T(1,128)}', space=vmem, size = 0x12000, scoped, tag = 'internal scratch']
  %s0 = inlined_call_operand.hbm [shape: f32[2,1024], index: 0, kind: input, shape index: {}]
  %s1 = inlined_call_operand.vmem [shape: f32[2,1], index: 1, kind: input, shape index: {}]
  %s2 = inlined_call_operand.hbm [shape: f32[2,1024], index: 2, kind: output, shape index: {}]
  %s3 = sld [smem:[#allocation0]]
  $region22: #{tpu_custom_call.1} parent=0
    _
  %s5 = ssub.s32 1, %s3
  %s6 = scalar_select 0, %s5, %s3
  $region1: #{tpu_custom_call.1} parent=0
    #allocation2 [shape = 'u8[8192]{0}', space=vmem, size = 0x2000, scoped, tag = 'input window, operand 0, single buffered']
    #allocation3 [shape = 's32[1]{0}', space=sflag, size = 0x4, scoped, tag = 'scoped memory for tpu_custom_call.1']
    #allocation4 [shape = 's32[1]{0}', space=sflag, size = 0x4, scoped, tag = 'scoped memory for tpu_custom_call.1']
    #allocation5 [shape = 'u8[8192]{0}', space=vmem, size = 0x2000, scoped, tag = 'output window, operand 0, single buffered']
    %7 = vsyncpa [#allocation3], 0
    %8 = vsyncpa [#allocation4], 0
    // Predicated region
    $region2: #{tpu_custom_call.1} parent=1 // pred_check
      _
    $region3: #{tpu_custom_call.1} parent=1 // pred_check_branch
      %10 = sbr.rel (0) target = $region5
    $region4: #{tpu_custom_call.1} parent=1 // pred_region
      %s12 = ssub.s32 256, 256
      %13 = vsyncadd [#allocation3], %s12
      %s15 = sshll.u32 [#allocation2], 4
      %s16 = int_to_ptr.vmem [resolvable:$true] %s15
      %18 = dma.hbm_to_vmem [thread:$0]  %s0, 256, %s16, [#allocation3]
    $region5: #{tpu_custom_call.1} parent=1 // pred_fallthru
      _
    // Predicated region
    $region6: #{tpu_custom_call.1} parent=1 // pred_check
      _
    $region7: #{tpu_custom_call.1} parent=1 // pred_check_branch
      %20 = sbr.rel (0) target = $region9
    $region8: #{tpu_custom_call.1} parent=1 // pred_region
      _
    $region9: #{tpu_custom_call.1} parent=1 // pred_fallthru
      _
    // Predicated region
    $region10: #{tpu_custom_call.1} parent=1 // pred_check
      _
    $region11: #{tpu_custom_call.1} parent=1 // pred_check_branch
      %22 = sbr.rel (0) target = $region13
    $region12: #{tpu_custom_call.1} parent=1 // pred_region
      %23 = dma.done [#allocation3], 256
    $region13: #{tpu_custom_call.1} parent=1 // pred_fallthru
      _
    %v24 = vld [vmem:[#allocation2] sm:$0xff]
    %v25 = vld [vmem:[#allocation2 + $0x8] sm:$0xff]
    %v26 = vld [vmem:[%s1] sm:$0x3]
    %28 = vset.pattern.permute.xlu0 0
    %29 = vperm.xlu0 %28, %v26
    %v30 = vpop.permute.xlu0 %29
    %v32 = vunpack.c.l.s4 269488144
    %v33 = vunpack.c.0.s8 %v32
    %v34 = vlaneseq
    %v35 = vshrl.u32 %v34, 7
    %v36 = vsub.s32 %v33, %v35
    %v37 = vrot.slane %v30, %v36
    %v39 = vmul.f32 %v24, %v37
    %v40 = vmul.f32 %v25, %v37
    %41 = vst [vmem:[#allocation5] sm:$0xff] %v39
    %42 = vst [vmem:[#allocation5 + $0x8] sm:$0xff] %v40
    // Predicated region
    $region14: #{tpu_custom_call.1} parent=1 // pred_check
      _
    $region15: #{tpu_custom_call.1} parent=1 // pred_check_branch
      %44 = sbr.rel (0) target = $region17
    $region16: #{tpu_custom_call.1} parent=1 // pred_region
      %s46 = ssub.s32 256, 256
      %47 = vsyncadd [#allocation4], %s46
      %s49 = sshll.u32 [#allocation5], 4
      %s50 = int_to_ptr.vmem [resolvable:$true] %s49
      %52 = dma.vmem_to_hbm [thread:$0]  %s50, 256, %s2, [#allocation4]
    $region17: #{tpu_custom_call.1} parent=1 // pred_fallthru
      _
    // Predicated region
    $region18: #{tpu_custom_call.1} parent=1 // pred_check
      _
    $region19: #{tpu_custom_call.1} parent=1 // pred_check_branch
      %54 = sbr.rel (0) target = $region21
    $region20: #{tpu_custom_call.1} parent=1 // pred_region
      %55 = dma.done [#allocation4], 256
    $region21: #{tpu_custom_call.1} parent=1 // pred_fallthru
      _
    %56 = vsyncpa [#allocation3], 1
    %57 = vsyncpa [#allocation4], 1

</llo_original>
